<compile_context>
chip_gen: v7x
topology: tpu7x:2x2x1
jax: 0.10.0
libtpu: 0.0.40
codegen_flags: <defaults>
</compile_context>

<pallas_src>
import functools

import jax
import jax.numpy as jnp
from jax.experimental import pallas as pl
from jax.experimental.pallas import tpu as pltpu

EPS = 1e-6
LANE = 128
SUBLANE = 8


def _round_up(x, m):
    return (x + m - 1) // m * m


def _pad2d(a, rows, cols):
    """Zero-pad a 2-D array up to (rows, cols) (no-op if already that shape)."""
    if a.shape == (rows, cols):
        return a
    return jnp.zeros((rows, cols), a.dtype).at[: a.shape[0], : a.shape[1]].set(a)


def policy_mean_kernel(x_ref, w1_ref, b1_ref, w2_ref, b2_ref, w3_ref, b3_ref,
                       loc_ref, *, act_dtype):
    """One batch tile of loc = fc3(tanh(fc2(tanh(fc1(x))))) + eps.

    x / weights are bf16 (MXU inputs), accumulation is f32, the tanh
    activations run in `act_dtype` (bf16 on v6e/v7x, f32 on v5-class chips).
    EPS is pre-folded into b3.
    """
    h = jnp.dot(x_ref[...], w1_ref[...],
                preferred_element_type=jnp.float32) + b1_ref[...]
    h = jnp.tanh(h.astype(act_dtype)).astype(jnp.bfloat16)

    h = jnp.dot(h, w2_ref[...],
                preferred_element_type=jnp.float32) + b2_ref[...]
    h = jnp.tanh(h.astype(act_dtype)).astype(jnp.bfloat16)

    loc_ref[...] = jnp.dot(h, w3_ref[...],
                           preferred_element_type=jnp.float32) + b3_ref[...]


def policy_forward(x, params, *, batch_tile=2048):
    """x: (B, state_space) f32.  Returns (loc (B, A), scale (A,)) of the Normal."""
    w1, b1, w2, b2, w3, b3, sigma = params
    B, S = x.shape
    H = w1.shape[1]
    A = w3.shape[1]

    # ---- chip-dependent knobs (device_kind is the robust query) ------------
    try:
        kind = jax.devices()[0].device_kind.lower()
    except Exception:  # pragma: no cover - defensive
        kind = ""
    is_v7 = "v7" in kind
    # bf16 VPU/EUP exists on v6e/v7x; keep f32 activations on v5-class chips.
    act_dtype = jnp.bfloat16 if ("v6" in kind or is_v7) else jnp.float32
    # v7x has 64 MiB physical VMEM -> stay at 32 MiB scoped; v5e/v6e have 128 MiB.
    vmem_limit = (32 if is_v7 else 64) * 1024 * 1024

    # ---- layout plumbing (wrapper-side, no extra kernel compute) -----------
    # lane-dense hidden and output head: pad H and A up to multiples of 128
    H_pad = _round_up(H, LANE)
    A_pad = _round_up(A, LANE)
    w1b = _pad2d(w1, S, H_pad).astype(jnp.bfloat16)
    b1p = _pad2d(b1, 1, H_pad)
    w2b = _pad2d(w2, H_pad, H_pad).astype(jnp.bfloat16)
    b2p = _pad2d(b2, 1, H_pad)
    w3b = _pad2d(w3, H_pad, A_pad).astype(jnp.bfloat16)
    b3p = _pad2d(b3, 1, A_pad) + EPS          # fold the +eps of the mean here

    # batch tiling: sublane-aligned tile, batch padded to a whole # of tiles.
    TB = min(batch_tile, _round_up(max(B, 1), SUBLANE))
    if is_v7 and B > SUBLANE:
        # guarantee >= 2 grid steps so the "parallel" axis feeds both TCs
        TB = min(TB, _round_up(_round_up(B, SUBLANE) // 2, SUBLANE))
    B_pad = _round_up(B, TB)
    xb = jnp.zeros((B_pad, S), jnp.bfloat16).at[:B, :].set(
        x.astype(jnp.bfloat16))           # bf16 x: half the input DMA bytes
    grid = (B_pad // TB,)

    const = lambda i: (0, 0)              # weights/biases resident across steps

    weight_bytes = 2 * (S * H_pad + H_pad * H_pad + H_pad * A_pad) \
        + 4 * (2 * H_pad + A_pad)
    cost = pl.CostEstimate(
        flops=2 * B_pad * (S * H_pad + H_pad * H_pad + H_pad * A_pad),
        transcendentals=2 * B_pad * H_pad,
        bytes_accessed=int(B_pad * S * 2 + weight_bytes + B_pad * A_pad * 4),
    )

    def _run(single_buffer_weights):
        # constant-index-map operands only need one VMEM buffer
        res = ({"pipeline_mode": pl.Buffered(1)}
               if single_buffer_weights else {})
        return pl.pallas_call(
            functools.partial(policy_mean_kernel, act_dtype=act_dtype),
            out_shape=jax.ShapeDtypeStruct((B_pad, A_pad), jnp.float32),
            grid=grid,
            in_specs=[
                pl.BlockSpec((TB, S), lambda i: (i, 0)),            # x tile
                pl.BlockSpec((S, H_pad), const, **res),             # W1
                pl.BlockSpec((1, H_pad), const, **res),             # b1
                pl.BlockSpec((H_pad, H_pad), const, **res),         # W2
                pl.BlockSpec((1, H_pad), const, **res),             # b2
                pl.BlockSpec((H_pad, A_pad), const, **res),         # W3
                pl.BlockSpec((1, A_pad), const, **res),             # b3 (+eps)
            ],
            out_specs=pl.BlockSpec((TB, A_pad), lambda i: (i, 0)),
            compiler_params=pltpu.CompilerParams(
                dimension_semantics=("parallel",),
                vmem_limit_bytes=vmem_limit,
            ),
            cost_estimate=cost,
        )(xb, w1b, b1p, w2b, b2p, w3b, b3p)

    try:
        loc_pad = jax.block_until_ready(_run(True))
    except Exception:
        # installed JAX rejected pipeline_mode=Buffered(1); use default buffering
        loc_pad = _run(False)

    loc = loc_pad[:B, :A]

    # x-independent actor head in plain JAX: numerically stable softplus
    scale = jax.nn.softplus(sigma) + EPS
    return loc, scale


def xavier_normal(key, fan_in, fan_out):
    std = (2.0 / (fan_in + fan_out)) ** 0.5
    return std * jax.random.normal(key, (fan_in, fan_out), dtype=jnp.float32)


def init_policy_params(key, state_space, hidden, action_space, init_sigma=0.5):
    k1, k2, k3 = jax.random.split(key, 3)
    w1 = xavier_normal(k1, state_space, hidden)
    b1 = jnp.zeros((1, hidden), jnp.float32)
    w2 = xavier_normal(k2, hidden, hidden)
    b2 = jnp.zeros((1, hidden), jnp.float32)
    w3 = xavier_normal(k3, hidden, action_space)
    b3 = jnp.zeros((1, action_space), jnp.float32)
    sigma = jnp.full((action_space,), init_sigma, jnp.float32)
    return (w1, b1, w2, b2, w3, b3, sigma)


def policy_forward_ref(x, params):
    """Pure-JAX (float32) reference for correctness checking."""
    w1, b1, w2, b2, w3, b3, sigma = params
    h = jnp.tanh(x @ w1 + b1)
    h = jnp.tanh(h @ w2 + b2)
    mean = h @ w3 + b3
    loc = mean + EPS
    scale = jax.nn.softplus(sigma) + EPS
    return loc, scale


if __name__ == "__main__":
    # Small shapes consistent with the module's forward pass.
    batch = 4
    state_space = 8
    hidden = 32
    action_space = 4

    key = jax.random.PRNGKey(0)
    pkey, xkey = jax.random.split(key)

    params = init_policy_params(pkey, state_space, hidden, action_space)
    x = jax.random.normal(xkey, (batch, state_space), dtype=jnp.float32)

    loc, scale = policy_forward(x, params)
    loc, scale = jax.block_until_ready((loc, scale))

    # sanity check against pure-JAX f32 reference
    loc_ref, scale_ref = policy_forward_ref(x, params)
    # bf16 matmul inputs / (possibly) bf16 tanh => bf16-level tolerance on loc
    assert loc.shape == loc_ref.shape, "loc shape mismatch"
    assert jnp.allclose(loc, loc_ref, atol=2e-2, rtol=2e-2), "loc mismatch"
    assert scale.shape == scale_ref.shape, "scale shape mismatch"
    assert jnp.allclose(scale, scale_ref, atol=1e-6), "scale mismatch"

    print("KERNEL_OK")
</pallas_src>

<mosaic_0001>
module attributes {stable_mosaic.version = 11 : i64} {
  func.func @policy_mean_kernel(%arg0: i32, %arg1: memref<8x8xbf16, #tpu.memory_space<vmem>>, %arg2: memref<8x128xbf16, #tpu.memory_space<vmem>>, %arg3: memref<1x128xf32, #tpu.memory_space<vmem>>, %arg4: memref<128x128xbf16, #tpu.memory_space<vmem>>, %arg5: memref<1x128xf32, #tpu.memory_space<vmem>>, %arg6: memref<128x128xbf16, #tpu.memory_space<vmem>>, %arg7: memref<1x128xf32, #tpu.memory_space<vmem>>, %arg8: memref<8x128xf32, #tpu.memory_space<vmem>>) attributes {dimension_semantics = [#tpu.dimension_semantics<parallel>], iteration_bounds = array<i64: 1>, scalar_prefetch = 0 : i64, scratch_operands = 0 : i64, tpu.core_type = #tpu.core_type<tc>, window_params = [{transform_indices = @transform_0, window_bounds = array<i64: 8, 8>}, {pipeline_mode = #tpu.pipeline_mode<synchronous>, transform_indices = @transform_1, window_bounds = array<i64: 8, 128>}, {pipeline_mode = #tpu.pipeline_mode<synchronous>, transform_indices = @transform_2, window_bounds = array<i64: 1, 128>}, {pipeline_mode = #tpu.pipeline_mode<synchronous>, transform_indices = @transform_3, window_bounds = array<i64: 128, 128>}, {pipeline_mode = #tpu.pipeline_mode<synchronous>, transform_indices = @transform_4, window_bounds = array<i64: 1, 128>}, {pipeline_mode = #tpu.pipeline_mode<synchronous>, transform_indices = @transform_5, window_bounds = array<i64: 128, 128>}, {pipeline_mode = #tpu.pipeline_mode<synchronous>, transform_indices = @transform_6, window_bounds = array<i64: 1, 128>}, {transform_indices = @transform_7, window_bounds = array<i64: 8, 128>}]} {
    %c0 = arith.constant 0 : index
    %c0_0 = arith.constant 0 : index
    %0 = vector.load %arg1[%c0, %c0_0] : memref<8x8xbf16, #tpu.memory_space<vmem>>, vector<8x8xbf16>
    %c0_1 = arith.constant 0 : index
    %c0_2 = arith.constant 0 : index
    %1 = vector.load %arg2[%c0_1, %c0_2] : memref<8x128xbf16, #tpu.memory_space<vmem>>, vector<8x128xbf16>
    %cst = arith.constant dense<0.000000e+00> : vector<8x128xf32>
    %2 = tpu.matmul %0, %1, %cst {dimension_numbers = #tpu.dot_dimension_numbers<[1], [0], [0], [1], [0, 0, 1, 1], [], []>} : vector<8x8xbf16>, vector<8x128xbf16>, vector<8x128xf32> -> vector<8x128xf32>
    %c0_3 = arith.constant 0 : index
    %c0_4 = arith.constant 0 : index
    %3 = vector.load %arg3[%c0_3, %c0_4] : memref<1x128xf32, #tpu.memory_space<vmem>>, vector<1x128xf32>
    %4 = vector.broadcast %3 : vector<1x128xf32> to vector<8x128xf32>
    %5 = arith.addf %2, %4 : vector<8x128xf32>
    %6 = math.tanh %5 : vector<8x128xf32>
    %7 = arith.truncf %6 : vector<8x128xf32> to vector<8x128xbf16>
    %c0_5 = arith.constant 0 : index
    %c0_6 = arith.constant 0 : index
    %8 = vector.load %arg4[%c0_5, %c0_6] : memref<128x128xbf16, #tpu.memory_space<vmem>>, vector<128x128xbf16>
    %cst_7 = arith.constant dense<0.000000e+00> : vector<8x128xf32>
    %9 = tpu.matmul %7, %8, %cst_7 {dimension_numbers = #tpu.dot_dimension_numbers<[1], [0], [0], [1], [0, 0, 1, 1], [], []>} : vector<8x128xbf16>, vector<128x128xbf16>, vector<8x128xf32> -> vector<8x128xf32>
    %c0_8 = arith.constant 0 : index
    %c0_9 = arith.constant 0 : index
    %10 = vector.load %arg5[%c0_8, %c0_9] : memref<1x128xf32, #tpu.memory_space<vmem>>, vector<1x128xf32>
    %11 = vector.broadcast %10 : vector<1x128xf32> to vector<8x128xf32>
    %12 = arith.addf %9, %11 : vector<8x128xf32>
    %13 = math.tanh %12 : vector<8x128xf32>
    %14 = arith.truncf %13 : vector<8x128xf32> to vector<8x128xbf16>
    %c0_10 = arith.constant 0 : index
    %c0_11 = arith.constant 0 : index
    %15 = vector.load %arg6[%c0_10, %c0_11] : memref<128x128xbf16, #tpu.memory_space<vmem>>, vector<128x128xbf16>
    %cst_12 = arith.constant dense<0.000000e+00> : vector<8x128xf32>
    %16 = tpu.matmul %14, %15, %cst_12 {dimension_numbers = #tpu.dot_dimension_numbers<[1], [0], [0], [1], [0, 0, 1, 1], [], []>} : vector<8x128xbf16>, vector<128x128xbf16>, vector<8x128xf32> -> vector<8x128xf32>
    %c0_13 = arith.constant 0 : index
    %c0_14 = arith.constant 0 : index
    %17 = vector.load %arg7[%c0_13, %c0_14] : memref<1x128xf32, #tpu.memory_space<vmem>>, vector<1x128xf32>
    %18 = vector.broadcast %17 : vector<1x128xf32> to vector<8x128xf32>
    %19 = arith.addf %16, %18 : vector<8x128xf32>
    %c0_15 = arith.constant 0 : index
    %c0_16 = arith.constant 0 : index
    %20 = vector.load %arg8[%c0_15, %c0_16] : memref<8x128xf32, #tpu.memory_space<vmem>>, vector<8x128xf32>
    tpu.vector_store %arg8[%c0_15, %c0_16], %19 {strides = array<i32>} : memref<8x128xf32, #tpu.memory_space<vmem>>, vector<8x128xf32>,
    return
  }
  func.func @transform_0(%arg0: i32) -> (i32, i32) {
    %c0_i32 = arith.constant 0 : i32
    %c0_i32_0 = arith.constant 0 : i32
    return %arg0, %c0_i32 : i32, i32
  }
  func.func @transform_1(%arg0: i32) -> (i32, i32) {
    %c0_i32 = arith.constant 0 : i32
    %c0_i32_0 = arith.constant 0 : i32
    %c0_i32_1 = arith.constant 0 : i32
    return %c0_i32, %c0_i32_0 : i32, i32
  }
  func.func @transform_2(%arg0: i32) -> (i32, i32) {
    %c0_i32 = arith.constant 0 : i32
    %c0_i32_0 = arith.constant 0 : i32
    %c0_i32_1 = arith.constant 0 : i32
    return %c0_i32, %c0_i32_0 : i32, i32
  }
  func.func @transform_3(%arg0: i32) -> (i32, i32) {
    %c0_i32 = arith.constant 0 : i32
    %c0_i32_0 = arith.constant 0 : i32
    %c0_i32_1 = arith.constant 0 : i32
    return %c0_i32, %c0_i32_0 : i32, i32
  }
  func.func @transform_4(%arg0: i32) -> (i32, i32) {
    %c0_i32 = arith.constant 0 : i32
    %c0_i32_0 = arith.constant 0 : i32
    %c0_i32_1 = arith.constant 0 : i32
    return %c0_i32, %c0_i32_0 : i32, i32
  }
  func.func @transform_5(%arg0: i32) -> (i32, i32) {
    %c0_i32 = arith.constant 0 : i32
    %c0_i32_0 = arith.constant 0 : i32
    %c0_i32_1 = arith.constant 0 : i32
    return %c0_i32, %c0_i32_0 : i32, i32
  }
  func.func @transform_6(%arg0: i32) -> (i32, i32) {
    %c0_i32 = arith.constant 0 : i32
    %c0_i32_0 = arith.constant 0 : i32
    %c0_i32_1 = arith.constant 0 : i32
    return %c0_i32, %c0_i32_0 : i32, i32
  }
  func.func @transform_7(%arg0: i32) -> (i32, i32) {
    %c0_i32 = arith.constant 0 : i32
    %c0_i32_0 = arith.constant 0 : i32
    return %arg0, %c0_i32 : i32, i32
  }
}

module attributes {stable_mosaic.version = 11 : i64} {
  func.func @policy_mean_kernel(%arg0: i32, %arg1: memref<8x8xbf16, #tpu.memory_space<vmem>>, %arg2: memref<8x128xbf16, #tpu.memory_space<vmem>>, %arg3: memref<1x128xf32, #tpu.memory_space<vmem>>, %arg4: memref<128x128xbf16, #tpu.memory_space<vmem>>, %arg5: memref<1x128xf32, #tpu.memory_space<vmem>>, %arg6: memref<128x128xbf16, #tpu.memory_space<vmem>>, %arg7: memref<1x128xf32, #tpu.memory_space<vmem>>, %arg8: memref<8x128xf32, #tpu.memory_space<vmem>>) attributes {dimension_semantics = [#tpu.dimension_semantics<parallel>], iteration_bounds = array<i64: 1>, scalar_prefetch = 0 : i64, scratch_operands = 0 : i64, tpu.core_type = #tpu.core_type<tc>, window_params = [{transform_indices = @transform_0, window_bounds = array<i64: 8, 8>}, {pipeline_mode = #tpu.pipeline_mode<synchronous>, transform_indices = @transform_1, window_bounds = array<i64: 8, 128>}, {pipeline_mode = #tpu.pipeline_mode<synchronous>, transform_indices = @transform_2, window_bounds = array<i64: 1, 128>}, {pipeline_mode = #tpu.pipeline_mode<synchronous>, transform_indices = @transform_3, window_bounds = array<i64: 128, 128>}, {pipeline_mode = #tpu.pipeline_mode<synchronous>, transform_indices = @transform_4, window_bounds = array<i64: 1, 128>}, {pipeline_mode = #tpu.pipeline_mode<synchronous>, transform_indices = @transform_5, window_bounds = array<i64: 128, 128>}, {pipeline_mode = #tpu.pipeline_mode<synchronous>, transform_indices = @transform_6, window_bounds = array<i64: 1, 128>}, {transform_indices = @transform_7, window_bounds = array<i64: 8, 128>}]} {
    %c0 = arith.constant 0 : index
    %c0_0 = arith.constant 0 : index
    %0 = vector.load %arg1[%c0, %c0_0] : memref<8x8xbf16, #tpu.memory_space<vmem>>, vector<8x8xbf16>
    %c0_1 = arith.constant 0 : index
    %c0_2 = arith.constant 0 : index
    %1 = vector.load %arg2[%c0_1, %c0_2] : memref<8x128xbf16, #tpu.memory_space<vmem>>, vector<8x128xbf16>
    %cst = arith.constant dense<0.000000e+00> : vector<8x128xf32>
    %2 = tpu.matmul %0, %1, %cst {dimension_numbers = #tpu.dot_dimension_numbers<[1], [0], [0], [1], [0, 0, 1, 1], [], []>} : vector<8x8xbf16>, vector<8x128xbf16>, vector<8x128xf32> -> vector<8x128xf32>
    %c0_3 = arith.constant 0 : index
    %c0_4 = arith.constant 0 : index
    %3 = vector.load %arg3[%c0_3, %c0_4] : memref<1x128xf32, #tpu.memory_space<vmem>>, vector<1x128xf32>
    %4 = vector.broadcast %3 : vector<1x128xf32> to vector<8x128xf32>
    %5 = arith.addf %2, %4 : vector<8x128xf32>
    %6 = math.tanh %5 : vector<8x128xf32>
    %7 = arith.truncf %6 : vector<8x128xf32> to vector<8x128xbf16>
    %c0_5 = arith.constant 0 : index
    %c0_6 = arith.constant 0 : index
    %8 = vector.load %arg4[%c0_5, %c0_6] : memref<128x128xbf16, #tpu.memory_space<vmem>>, vector<128x128xbf16>
    %cst_7 = arith.constant dense<0.000000e+00> : vector<8x128xf32>
    %9 = tpu.matmul %7, %8, %cst_7 {dimension_numbers = #tpu.dot_dimension_numbers<[1], [0], [0], [1], [0, 0, 1, 1], [], []>} : vector<8x128xbf16>, vector<128x128xbf16>, vector<8x128xf32> -> vector<8x128xf32>
    %c0_8 = arith.constant 0 : index
    %c0_9 = arith.constant 0 : index
    %10 = vector.load %arg5[%c0_8, %c0_9] : memref<1x128xf32, #tpu.memory_space<vmem>>, vector<1x128xf32>
    %11 = vector.broadcast %10 : vector<1x128xf32> to vector<8x128xf32>
    %12 = arith.addf %9, %11 : vector<8x128xf32>
    %13 = math.tanh %12 : vector<8x128xf32>
    %14 = arith.truncf %13 : vector<8x128xf32> to vector<8x128xbf16>
    %c0_10 = arith.constant 0 : index
    %c0_11 = arith.constant 0 : index
    %15 = vector.load %arg6[%c0_10, %c0_11] : memref<128x128xbf16, #tpu.memory_space<vmem>>, vector<128x128xbf16>
    %cst_12 = arith.constant dense<0.000000e+00> : vector<8x128xf32>
    %16 = tpu.matmul %14, %15, %cst_12 {dimension_numbers = #tpu.dot_dimension_numbers<[1], [0], [0], [1], [0, 0, 1, 1], [], []>} : vector<8x128xbf16>, vector<128x128xbf16>, vector<8x128xf32> -> vector<8x128xf32>
    %c0_13 = arith.constant 0 : index
    %c0_14 = arith.constant 0 : index
    %17 = vector.load %arg7[%c0_13, %c0_14] : memref<1x128xf32, #tpu.memory_space<vmem>>, vector<1x128xf32>
    %18 = vector.broadcast %17 : vector<1x128xf32> to vector<8x128xf32>
    %19 = arith.addf %16, %18 : vector<8x128xf32>
    %c0_15 = arith.constant 0 : index
    %c0_16 = arith.constant 0 : index
    %20 = vector.load %arg8[%c0_15, %c0_16] : memref<8x128xf32, #tpu.memory_space<vmem>>, vector<8x128xf32>
    tpu.vector_store %arg8[%c0_15, %c0_16], %19 {strides = array<i32>} : memref<8x128xf32, #tpu.memory_space<vmem>>, vector<8x128xf32>,
    return
  }
  func.func @transform_0(%arg0: i32) -> (i32, i32) {
    %c0_i32 = arith.constant 0 : i32
    %c0_i32_0 = arith.constant 0 : i32
    return %arg0, %c0_i32 : i32, i32
  }
  func.func @transform_1(%arg0: i32) -> (i32, i32) {
    %c0_i32 = arith.constant 0 : i32
    %c0_i32_0 = arith.constant 0 : i32
    %c0_i32_1 = arith.constant 0 : i32
    return %c0_i32, %c0_i32_0 : i32, i32
  }
  func.func @transform_2(%arg0: i32) -> (i32, i32) {
    %c0_i32 = arith.constant 0 : i32
    %c0_i32_0 = arith.constant 0 : i32
    %c0_i32_1 = arith.constant 0 : i32
    return %c0_i32, %c0_i32_0 : i32, i32
  }
  func.func @transform_3(%arg0: i32) -> (i32, i32) {
    %c0_i32 = arith.constant 0 : i32
    %c0_i32_0 = arith.constant 0 : i32
    %c0_i32_1 = arith.constant 0 : i32
    return %c0_i32, %c0_i32_0 : i32, i32
  }
  func.func @transform_4(%arg0: i32) -> (i32, i32) {
    %c0_i32 = arith.constant 0 : i32
    %c0_i32_0 = arith.constant 0 : i32
    %c0_i32_1 = arith.constant 0 : i32
    return %c0_i32, %c0_i32_0 : i32, i32
  }
  func.func @transform_5(%arg0: i32) -> (i32, i32) {
    %c0_i32 = arith.constant 0 : i32
    %c0_i32_0 = arith.constant 0 : i32
    %c0_i32_1 = arith.constant 0 : i32
    return %c0_i32, %c0_i32_0 : i32, i32
  }
  func.func @transform_6(%arg0: i32) -> (i32, i32) {
    %c0_i32 = arith.constant 0 : i32
    %c0_i32_0 = arith.constant 0 : i32
    %c0_i32_1 = arith.constant 0 : i32
    return %c0_i32, %c0_i32_0 : i32, i32
  }
  func.func @transform_7(%arg0: i32) -> (i32, i32) {
    %c0_i32 = arith.constant 0 : i32
    %c0_i32_0 = arith.constant 0 : i32
    return %arg0, %c0_i32 : i32, i32
  }
}

</mosaic_0001>

<llo_original>
// kernel: tpu_custom_call.1
$region0: #{tpu_custom_call.1}
  #allocation0 [shape = 'u32[]', space=smem, size = 0x4, offset = 0x4, fixed_abs, tag = 'smem constant byte address 0x4 - core index']
  #allocation1 [shape = 'u32[144,128]{1,0:T(1,128)}', space=vmem, size = 0x12000, scoped, tag = 'internal scratch']
  %s0 = inlined_call_operand.hbm [shape: bf16[8,8], index: 0, kind: input, shape index: {}]
  %s1 = inlined_call_operand.hbm [shape: bf16[8,128], index: 1, kind: input, shape index: {}]
  %s2 = inlined_call_operand.hbm [shape: f32[1,128], index: 2, kind: input, shape index: {}]
  %s3 = inlined_call_operand.hbm [shape: bf16[128,128], index: 3, kind: input, shape index: {}]
  %s4 = inlined_call_operand.hbm [shape: f32[1,128], index: 4, kind: input, shape index: {}]
  %s5 = inlined_call_operand.hbm [shape: bf16[128,128], index: 5, kind: input, shape index: {}]
  %s6 = inlined_call_operand.hbm [shape: f32[1,128], index: 6, kind: input, shape index: {}]
  %s7 = inlined_call_operand.hbm [shape: f32[8,128], index: 7, kind: output, shape index: {}]
  %s8 = sld [smem:[#allocation0]]
  $region66: #{tpu_custom_call.1} parent=0
    _
  %s10 = ssub.s32 1, %s8
  %s11 = scalar_select 0, %s10, %s8
  $region1: #{tpu_custom_call.1} parent=0
    #allocation2 [shape = 'u8[2048]{0}', space=vmem, size = 0x800, scoped, tag = 'input window, operand 0, single buffered']
    #allocation3 [shape = 's32[1]{0}', space=sflag, size = 0x4, scoped, tag = 'scoped memory for tpu_custom_call.1']
    #allocation4 [shape = 's32[1]{0}', space=sflag, size = 0x4, scoped, tag = 'scoped memory for tpu_custom_call.1']
    #allocation5 [shape = 'u8[2048]{0}', space=vmem, size = 0x800, scoped, tag = 'input window, operand 1, single buffered']
    #allocation6 [shape = 's32[1]{0}', space=sflag, size = 0x4, scoped, tag = 'scoped memory for tpu_custom_call.1']
    #allocation7 [shape = 'u8[512]{0}', space=vmem, size = 0x400, scoped, tag = 'input window, operand 2, single buffered']
    #allocation8 [shape = 'u8[32768]{0}', space=vmem, size = 0x8000, scoped, tag = 'input window, operand 3, single buffered']
    #allocation9 [shape = 's32[1]{0}', space=sflag, size = 0x4, scoped, tag = 'scoped memory for tpu_custom_call.1']
    #allocation10 [shape = 'u8[512]{0}', space=vmem, size = 0x400, scoped, tag = 'input window, operand 4, single buffered']
    #allocation11 [shape = 'u8[32768]{0}', space=vmem, size = 0x8000, scoped, tag = 'input window, operand 5, single buffered']
    #allocation12 [shape = 's32[1]{0}', space=sflag, size = 0x4, scoped, tag = 'scoped memory for tpu_custom_call.1']
    #allocation13 [shape = 'u8[512]{0}', space=vmem, size = 0x400, scoped, tag = 'input window, operand 6, single buffered']
    #allocation14 [shape = 'u8[4096]{0}', space=vmem, size = 0x1000, scoped, tag = 'output window, operand 0, single buffered']
    %12 = vsyncpa [#allocation3], 0
    %13 = vsyncpa [#allocation6], 0
    %14 = vsyncpa [#allocation9], 0
    %15 = vsyncpa [#allocation12], 0
    %16 = vsyncpa [#allocation4], 0
    // Predicated region
    $region2: #{tpu_custom_call.1} parent=1 // pred_check
      _
    $region3: #{tpu_custom_call.1} parent=1 // pred_check_branch
      %18 = sbr.rel (0) target = $region5
    $region4: #{tpu_custom_call.1} parent=1 // pred_region
      %s20 = ssub.s32 64, 64
      %21 = vsyncadd [#allocation3], %s20
      %s23 = sshll.u32 [#allocation2], 4
      %s24 = int_to_ptr.vmem [resolvable:$true] %s23
      %26 = dma.hbm_to_vmem [thread:$0]  %s0, 64, %s24, [#allocation3]
    $region5: #{tpu_custom_call.1} parent=1 // pred_fallthru
      _
    // Predicated region
    $region6: #{tpu_custom_call.1} parent=1 // pred_check
      _
    $region7: #{tpu_custom_call.1} parent=1 // pred_check_branch
      %28 = sbr.rel (0) target = $region9
    $region8: #{tpu_custom_call.1} parent=1 // pred_region
      %s30 = ssub.s32 64, 64
      %31 = vsyncadd [#allocation6], %s30
      %s33 = sshll.u32 [#allocation5], 4
      %s34 = int_to_ptr.vmem [resolvable:$true] %s33
      %36 = dma.hbm_to_vmem [thread:$0]  %s1, 64, %s34, [#allocation6]
    $region9: #{tpu_custom_call.1} parent=1 // pred_fallthru
      _
    // Predicated region
    $region10: #{tpu_custom_call.1} parent=1 // pred_check
      _
    $region11: #{tpu_custom_call.1} parent=1 // pred_check_branch
      %38 = sbr.rel (0) target = $region13
    $region12: #{tpu_custom_call.1} parent=1 // pred_region
      %s40 = ssub.s32 16, 16
      %41 = vsyncadd [#allocation6], %s40
      %s43 = sshll.u32 [#allocation7], 4
      %s44 = int_to_ptr.vmem [resolvable:$true] %s43
      %46 = dma.hbm_to_vmem [thread:$0]  %s2, 16, %s44, [#allocation6]
    $region13: #{tpu_custom_call.1} parent=1 // pred_fallthru
      _
    // Predicated region
    $region14: #{tpu_custom_call.1} parent=1 // pred_check
      _
    $region15: #{tpu_custom_call.1} parent=1 // pred_check_branch
      %48 = sbr.rel (0) target = $region17
    $region16: #{tpu_custom_call.1} parent=1 // pred_region
      %s50 = ssub.s32 1024, 1024
      %51 = vsyncadd [#allocation9], %s50
      %s52 = sshll.u32 [#allocation8], 4
      %s53 = int_to_ptr.vmem [resolvable:$true] %s52
      %58 = dma.hbm_to_vmem [thread:$0]  %s3, 1024, %s53, [#allocation9], 64, 64, 4
    $region17: #{tpu_custom_call.1} parent=1 // pred_fallthru
      _
    // Predicated region
    $region18: #{tpu_custom_call.1} parent=1 // pred_check
      _
    $region19: #{tpu_custom_call.1} parent=1 // pred_check_branch
      %60 = sbr.rel (0) target = $region21
    $region20: #{tpu_custom_call.1} parent=1 // pred_region
      %s62 = ssub.s32 16, 16
      %63 = vsyncadd [#allocation9], %s62
      %s65 = sshll.u32 [#allocation10], 4
      %s66 = int_to_ptr.vmem [resolvable:$true] %s65
      %68 = dma.hbm_to_vmem [thread:$0]  %s4, 16, %s66, [#allocation9]
    $region21: #{tpu_custom_call.1} parent=1 // pred_fallthru
      _
    // Predicated region
    $region22: #{tpu_custom_call.1} parent=1 // pred_check
      _
    $region23: #{tpu_custom_call.1} parent=1 // pred_check_branch
      %70 = sbr.rel (0) target = $region25
    $region24: #{tpu_custom_call.1} parent=1 // pred_region
      %s72 = ssub.s32 1024, 1024
      %73 = vsyncadd [#allocation12], %s72
      %s74 = sshll.u32 [#allocation11], 4
      %s75 = int_to_ptr.vmem [resolvable:$true] %s74
      %80 = dma.hbm_to_vmem [thread:$0]  %s5, 1024, %s75, [#allocation12], 64, 64, 4
    $region25: #{tpu_custom_call.1} parent=1 // pred_fallthru
      _
    // Predicated region
    $region26: #{tpu_custom_call.1} parent=1 // pred_check
      _
    $region27: #{tpu_custom_call.1} parent=1 // pred_check_branch
      %82 = sbr.rel (0) target = $region29
    $region28: #{tpu_custom_call.1} parent=1 // pred_region
      %s84 = ssub.s32 16, 16
      %85 = vsyncadd [#allocation12], %s84
      %s87 = sshll.u32 [#allocation13], 4
      %s88 = int_to_ptr.vmem [resolvable:$true] %s87
      %90 = dma.hbm_to_vmem [thread:$0]  %s6, 16, %s88, [#allocation12]
    $region29: #{tpu_custom_call.1} parent=1 // pred_fallthru
      _
    // Predicated region
    $region30: #{tpu_custom_call.1} parent=1 // pred_check
      _
    $region31: #{tpu_custom_call.1} parent=1 // pred_check_branch
      %92 = sbr.rel (0) target = $region33
    $region32: #{tpu_custom_call.1} parent=1 // pred_region
      %93 = dma.done [#allocation3], 64
    $region33: #{tpu_custom_call.1} parent=1 // pred_fallthru
      _
    // Predicated region
    $region34: #{tpu_custom_call.1} parent=1 // pred_check
      _
    $region35: #{tpu_custom_call.1} parent=1 // pred_check_branch
      %95 = sbr.rel (0) target = $region37
    $region36: #{tpu_custom_call.1} parent=1 // pred_region
      %96 = dma.done [#allocation6], 64
    $region37: #{tpu_custom_call.1} parent=1 // pred_fallthru
      _
    // Predicated region
    $region38: #{tpu_custom_call.1} parent=1 // pred_check
      _
    $region39: #{tpu_custom_call.1} parent=1 // pred_check_branch
      %98 = sbr.rel (0) target = $region41
    $region40: #{tpu_custom_call.1} parent=1 // pred_region
      %99 = dma.done [#allocation6], 16
    $region41: #{tpu_custom_call.1} parent=1 // pred_fallthru
      _
    // Predicated region
    $region42: #{tpu_custom_call.1} parent=1 // pred_check
      _
    $region43: #{tpu_custom_call.1} parent=1 // pred_check_branch
      %101 = sbr.rel (0) target = $region45
    $region44: #{tpu_custom_call.1} parent=1 // pred_region
      %102 = dma.done [#allocation9], 1024
    $region45: #{tpu_custom_call.1} parent=1 // pred_fallthru
      _
    // Predicated region
    $region46: #{tpu_custom_call.1} parent=1 // pred_check
      _
    $region47: #{tpu_custom_call.1} parent=1 // pred_check_branch
      %104 = sbr.rel (0) target = $region49
    $region48: #{tpu_custom_call.1} parent=1 // pred_region
      %105 = dma.done [#allocation9], 16
    $region49: #{tpu_custom_call.1} parent=1 // pred_fallthru
      _
    // Predicated region
    $region50: #{tpu_custom_call.1} parent=1 // pred_check
      _
    $region51: #{tpu_custom_call.1} parent=1 // pred_check_branch
      %107 = sbr.rel (0) target = $region53
    $region52: #{tpu_custom_call.1} parent=1 // pred_region
      %108 = dma.done [#allocation12], 1024
    $region53: #{tpu_custom_call.1} parent=1 // pred_fallthru
      _
    // Predicated region
    $region54: #{tpu_custom_call.1} parent=1 // pred_check
      _
    $region55: #{tpu_custom_call.1} parent=1 // pred_check_branch
      %110 = sbr.rel (0) target = $region57
    $region56: #{tpu_custom_call.1} parent=1 // pred_region
      %111 = dma.done [#allocation12], 16
    $region57: #{tpu_custom_call.1} parent=1 // pred_fallthru
      _
    %v113 = vld [vmem:[#allocation2] sm:$0xf]
    %v114 = vld [vmem:[#allocation5] sm:$0xf]
    %v115 = vld [vmem:[#allocation7] sm:$0x1]
    %v117 = vlaneseq
    %v118 = vshrl.u32 %v117, 7
    %v119 = vsub.s32 0, %v118
    %v120 = vrot.slane %v115, %v119
    %vm122 = vcmask 64512
    %v124 = vsel %vm122, %v113, 0
    %vm126 = vcmask 1043456
    %v128 = vsel %vm126, %v114, 0
    %130 = vmatprep.subr.bf16.mxu0 0
    %131 = vmatpush1.bf16.msra.mxu0 %v128
    %132 = vmatprep.subr.bf16.mxu0 0
    %133 = vmatpush1.bf16.msra.mxu0 0
    %134 = vmatprep.subr.bf16.mxu0 0
    %135 = vmatpush1.bf16.msra.mxu0 0
    %136 = vmatprep.subr.bf16.mxu0 0
    %137 = vmatpush1.bf16.msra.mxu0 0
    %138 = vmatprep.subr.bf16.mxu0 0
    %139 = vmatpush1.bf16.msra.mxu0 0
    %140 = vmatprep.subr.bf16.mxu0 0
    %141 = vmatpush1.bf16.msra.mxu0 0
    %142 = vmatprep.subr.bf16.mxu0 0
    %143 = vmatpush1.bf16.msra.mxu0 0
    %144 = vmatprep.subr.bf16.mxu0 0
    %145 = vmatpush1.bf16.msra.mxu0 0
    %146 = vmatprep.subr.bf16.mxu0 0
    %147 = vmatpush1.bf16.msra.mxu0 0
    %148 = vmatprep.subr.bf16.mxu0 0
    %149 = vmatpush1.bf16.msra.mxu0 0
    %150 = vmatprep.subr.bf16.mxu0 0
    %151 = vmatpush1.bf16.msra.mxu0 0
    %152 = vmatprep.subr.bf16.mxu0 0
    %153 = vmatpush1.bf16.msra.mxu0 0
    %154 = vmatprep.subr.bf16.mxu0 0
    %155 = vmatpush1.bf16.msra.mxu0 0
    %156 = vmatprep.subr.bf16.mxu0 0
    %157 = vmatpush1.bf16.msra.mxu0 0
    %158 = vmatprep.subr.bf16.mxu0 0
    %159 = vmatpush1.bf16.msra.mxu0 0
    %160 = vmatprep.subr.bf16.mxu0 0
    %161 = vmatpush1.bf16.msra.mxu0 0
    %162 = vmatprep.mubr.bf16.mxu0 0
    %163 = vmatmul.mubr.bf16.gmra.mrb[0].mxu0 %v124
    %v164 = vpop.f32.mrb[0].mxu0
    %v165 = vadd.f32 %v120, %v164
    %v166 = vpop.f32.mrb[0].mxu0
    %v167 = vpop.f32.mrb[0].mxu0
    %v168 = vpop.f32.mrb[0].mxu0
    %169 = vdwg.mxu0
    %v170 = vtanh.pop %v165
    %v171 = vpack.c.bf16 %v170, %v170
    %v172 = vld [vmem:[#allocation8] sm:$0xf]
    %v173 = vld [vmem:[#allocation8 + $0x4] sm:$0xf]
    %v174 = vld [vmem:[#allocation8 + $0x8] sm:$0xf]
    %v175 = vld [vmem:[#allocation8 + $0xc] sm:$0xf]
    %v176 = vld [vmem:[#allocation8 + $0x10] sm:$0xf]
    %v177 = vld [vmem:[#allocation8 + $0x14] sm:$0xf]
    %v178 = vld [vmem:[#allocation8 + $0x18] sm:$0xf]
    %v179 = vld [vmem:[#allocation8 + $0x1c] sm:$0xf]
    %v180 = vld [vmem:[#allocation8 + $0x20] sm:$0xf]
    %v181 = vld [vmem:[#allocation8 + $0x24] sm:$0xf]
    %v182 = vld [vmem:[#allocation8 + $0x28] sm:$0xf]
    %v183 = vld [vmem:[#allocation8 + $0x2c] sm:$0xf]
    %v184 = vld [vmem:[#allocation8 + $0x30] sm:$0xf]
    %v185 = vld [vmem:[#allocation8 + $0x34] sm:$0xf]
    %v186 = vld [vmem:[#allocation8 + $0x38] sm:$0xf]
    %v187 = vld [vmem:[#allocation8 + $0x3c] sm:$0xf]
    %v188 = vld [vmem:[#allocation10] sm:$0x1]
    %v190 = vlaneseq
    %v191 = vshrl.u32 %v190, 7
    %v192 = vsub.s32 0, %v191
    %v193 = vrot.slane %v188, %v192
    %v211 = vunpack.c.l.b16 %v172
    %v212 = vunpack.c.l.b16 %v173
    %v213 = vunpack.c.l.b16 %v174
    %v214 = vunpack.c.l.b16 %v175
    %v215 = vunpack.c.l.b16 %v176
    %v216 = vunpack.c.l.b16 %v177
    %v217 = vunpack.c.l.b16 %v178
    %v218 = vunpack.c.l.b16 %v179
    %v219 = vunpack.c.l.b16 %v180
    %v220 = vunpack.c.l.b16 %v181
    %v221 = vunpack.c.l.b16 %v182
    %v222 = vunpack.c.l.b16 %v183
    %v223 = vunpack.c.l.b16 %v184
    %v224 = vunpack.c.l.b16 %v185
    %v225 = vunpack.c.l.b16 %v186
    %v226 = vunpack.c.l.b16 %v187
    %v227 = vpack.c.b16 %v212, %v211
    %v228 = vpack.c.b16 %v214, %v213
    %v229 = vpack.c.b16 %v216, %v215
    %v230 = vpack.c.b16 %v218, %v217
    %v231 = vpack.c.b16 %v220, %v219
    %v232 = vpack.c.b16 %v222, %v221
    %v233 = vpack.c.b16 %v224, %v223
    %v234 = vpack.c.b16 %v226, %v225
    %243 = vmatprep.subr.bf16.mxu0 0
    %244 = vmatpush1.bf16.msra.mxu0 %v227
    %245 = vmatprep.subr.bf16.mxu0 0
    %246 = vmatpush1.bf16.msra.mxu0 %v228
    %247 = vmatprep.subr.bf16.mxu0 0
    %248 = vmatpush1.bf16.msra.mxu0 %v229
    %249 = vmatprep.subr.bf16.mxu0 0
    %250 = vmatpush1.bf16.msra.mxu0 %v230
    %251 = vmatprep.subr.bf16.mxu0 0
    %252 = vmatpush1.bf16.msra.mxu0 %v231
    %253 = vmatprep.subr.bf16.mxu0 0
    %254 = vmatpush1.bf16.msra.mxu0 %v232
    %255 = vmatprep.subr.bf16.mxu0 0
    %256 = vmatpush1.bf16.msra.mxu0 %v233
    %257 = vmatprep.subr.bf16.mxu0 0
    %258 = vmatpush1.bf16.msra.mxu0 %v234
    %259 = vmatprep.subr.bf16.mxu0 0
    %260 = vmatpush1.bf16.msra.mxu0 0
    %261 = vmatprep.subr.bf16.mxu0 0
    %262 = vmatpush1.bf16.msra.mxu0 0
    %263 = vmatprep.subr.bf16.mxu0 0
    %264 = vmatpush1.bf16.msra.mxu0 0
    %265 = vmatprep.subr.bf16.mxu0 0
    %266 = vmatpush1.bf16.msra.mxu0 0
    %267 = vmatprep.subr.bf16.mxu0 0
    %268 = vmatpush1.bf16.msra.mxu0 0
    %269 = vmatprep.subr.bf16.mxu0 0
    %270 = vmatpush1.bf16.msra.mxu0 0
    %271 = vmatprep.subr.bf16.mxu0 0
    %272 = vmatpush1.bf16.msra.mxu0 0
    %273 = vmatprep.subr.bf16.mxu0 0
    %274 = vmatpush1.bf16.msra.mxu0 0
    %275 = vmatprep.mubr.bf16.mxu0 0
    %276 = vmatmul.mubr.bf16.gmra.mrb[0].mxu0 %v171
    %v277 = vpop.f32.mrb[0].mxu0
    %v278 = vadd.f32 %v193, %v277
    %v279 = vpop.f32.mrb[0].mxu0
    %v280 = vpop.f32.mrb[0].mxu0
    %v281 = vpop.f32.mrb[0].mxu0
    %282 = vdwg.mxu0
    %v283 = vtanh.pop %v278
    %v284 = vpack.c.bf16 %v283, %v283
    %v285 = vld [vmem:[#allocation11] sm:$0xf]
    %v286 = vld [vmem:[#allocation11 + $0x4] sm:$0xf]
    %v287 = vld [vmem:[#allocation11 + $0x8] sm:$0xf]
    %v288 = vld [vmem:[#allocation11 + $0xc] sm:$0xf]
    %v289 = vld [vmem:[#allocation11 + $0x10] sm:$0xf]
    %v290 = vld [vmem:[#allocation11 + $0x14] sm:$0xf]
    %v291 = vld [vmem:[#allocation11 + $0x18] sm:$0xf]
    %v292 = vld [vmem:[#allocation11 + $0x1c] sm:$0xf]
    %v293 = vld [vmem:[#allocation11 + $0x20] sm:$0xf]
    %v294 = vld [vmem:[#allocation11 + $0x24] sm:$0xf]
    %v295 = vld [vmem:[#allocation11 + $0x28] sm:$0xf]
    %v296 = vld [vmem:[#allocation11 + $0x2c] sm:$0xf]
    %v297 = vld [vmem:[#allocation11 + $0x30] sm:$0xf]
    %v298 = vld [vmem:[#allocation11 + $0x34] sm:$0xf]
    %v299 = vld [vmem:[#allocation11 + $0x38] sm:$0xf]
    %v300 = vld [vmem:[#allocation11 + $0x3c] sm:$0xf]
    %v301 = vld [vmem:[#allocation13] sm:$0x1]
    %v303 = vlaneseq
    %v304 = vshrl.u32 %v303, 7
    %v305 = vsub.s32 0, %v304
    %v306 = vrot.slane %v301, %v305
    %v324 = vunpack.c.l.b16 %v285
    %v325 = vunpack.c.l.b16 %v286
    %v326 = vunpack.c.l.b16 %v287
    %v327 = vunpack.c.l.b16 %v288
    %v328 = vunpack.c.l.b16 %v289
    %v329 = vunpack.c.l.b16 %v290
    %v330 = vunpack.c.l.b16 %v291
    %v331 = vunpack.c.l.b16 %v292
    %v332 = vunpack.c.l.b16 %v293
    %v333 = vunpack.c.l.b16 %v294
    %v334 = vunpack.c.l.b16 %v295
    %v335 = vunpack.c.l.b16 %v296
    %v336 = vunpack.c.l.b16 %v297
    %v337 = vunpack.c.l.b16 %v298
    %v338 = vunpack.c.l.b16 %v299
    %v339 = vunpack.c.l.b16 %v300
    %v340 = vpack.c.b16 %v325, %v324
    %v341 = vpack.c.b16 %v327, %v326
    %v342 = vpack.c.b16 %v329, %v328
    %v343 = vpack.c.b16 %v331, %v330
    %v344 = vpack.c.b16 %v333, %v332
    %v345 = vpack.c.b16 %v335, %v334
    %v346 = vpack.c.b16 %v337, %v336
    %v347 = vpack.c.b16 %v339, %v338
    %356 = vmatprep.subr.bf16.mxu0 0
    %357 = vmatpush1.bf16.msra.mxu0 %v340
    %358 = vmatprep.subr.bf16.mxu0 0
    %359 = vmatpush1.bf16.msra.mxu0 %v341
    %360 = vmatprep.subr.bf16.mxu0 0
    %361 = vmatpush1.bf16.msra.mxu0 %v342
    %362 = vmatprep.subr.bf16.mxu0 0
    %363 = vmatpush1.bf16.msra.mxu0 %v343
    %364 = vmatprep.subr.bf16.mxu0 0
    %365 = vmatpush1.bf16.msra.mxu0 %v344
    %366 = vmatprep.subr.bf16.mxu0 0
    %367 = vmatpush1.bf16.msra.mxu0 %v345
    %368 = vmatprep.subr.bf16.mxu0 0
    %369 = vmatpush1.bf16.msra.mxu0 %v346
    %370 = vmatprep.subr.bf16.mxu0 0
    %371 = vmatpush1.bf16.msra.mxu0 %v347
    %372 = vmatprep.subr.bf16.mxu0 0
    %373 = vmatpush1.bf16.msra.mxu0 0
    %374 = vmatprep.subr.bf16.mxu0 0
    %375 = vmatpush1.bf16.msra.mxu0 0
    %376 = vmatprep.subr.bf16.mxu0 0
    %377 = vmatpush1.bf16.msra.mxu0 0
    %378 = vmatprep.subr.bf16.mxu0 0
    %379 = vmatpush1.bf16.msra.mxu0 0
    %380 = vmatprep.subr.bf16.mxu0 0
    %381 = vmatpush1.bf16.msra.mxu0 0
    %382 = vmatprep.subr.bf16.mxu0 0
    %383 = vmatpush1.bf16.msra.mxu0 0
    %384 = vmatprep.subr.bf16.mxu0 0
    %385 = vmatpush1.bf16.msra.mxu0 0
    %386 = vmatprep.subr.bf16.mxu0 0
    %387 = vmatpush1.bf16.msra.mxu0 0
    %388 = vmatprep.mubr.bf16.mxu0 0
    %389 = vmatmul.mubr.bf16.gmra.mrb[0].mxu0 %v284
    %v390 = vpop.f32.mrb[0].mxu0
    %v391 = vadd.f32 %v306, %v390
    %v392 = vpop.f32.mrb[0].mxu0
    %v393 = vpop.f32.mrb[0].mxu0
    %v394 = vpop.f32.mrb[0].mxu0
    %395 = vdwg.mxu0
    %396 = vst [vmem:[#allocation14] sm:$0xff] %v391
    // Predicated region
    $region58: #{tpu_custom_call.1} parent=1 // pred_check
      _
    $region59: #{tpu_custom_call.1} parent=1 // pred_check_branch
      %398 = sbr.rel (0) target = $region61
    $region60: #{tpu_custom_call.1} parent=1 // pred_region
      %s400 = ssub.s32 128, 128
      %401 = vsyncadd [#allocation4], %s400
      %s403 = sshll.u32 [#allocation14], 4
      %s404 = int_to_ptr.vmem [resolvable:$true] %s403
      %406 = dma.vmem_to_hbm [thread:$0]  %s404, 128, %s7, [#allocation4]
    $region61: #{tpu_custom_call.1} parent=1 // pred_fallthru
      _
    // Predicated region
    $region62: #{tpu_custom_call.1} parent=1 // pred_check
      _
    $region63: #{tpu_custom_call.1} parent=1 // pred_check_branch
      %408 = sbr.rel (0) target = $region65
    $region64: #{tpu_custom_call.1} parent=1 // pred_region
      %409 = dma.done [#allocation4], 128
    $region65: #{tpu_custom_call.1} parent=1 // pred_fallthru
      _
    %410 = vsyncpa [#allocation3], 1
    %411 = vsyncpa [#allocation6], 1
    %412 = vsyncpa [#allocation9], 1
    %413 = vsyncpa [#allocation12], 1
    %414 = vsyncpa [#allocation4], 1

// kernel: tpu_custom_call.1
$region0: #{tpu_custom_call.1}
  #allocation0 [shape = 'u32[]', space=smem, size = 0x4, offset = 0x4, fixed_abs, tag = 'smem constant byte address 0x4 - core index']
  #allocation1 [shape = 'u32[144,128]{1,0:T(1,128)}', space=vmem, size = 0x12000, scoped, tag = 'internal scratch']
  %s0 = inlined_call_operand.hbm [shape: bf16[8,8], index: 0, kind: input, shape index: {}]
  %s1 = inlined_call_operand.hbm [shape: bf16[8,128], index: 1, kind: input, shape index: {}]
  %s2 = inlined_call_operand.hbm [shape: f32[1,128], index: 2, kind: input, shape index: {}]
  %s3 = inlined_call_operand.hbm [shape: bf16[128,128], index: 3, kind: input, shape index: {}]
  %s4 = inlined_call_operand.hbm [shape: f32[1,128], index: 4, kind: input, shape index: {}]
  %s5 = inlined_call_operand.hbm [shape: bf16[128,128], index: 5, kind: input, shape index: {}]
  %s6 = inlined_call_operand.hbm [shape: f32[1,128], index: 6, kind: input, shape index: {}]
  %s7 = inlined_call_operand.hbm [shape: f32[8,128], index: 7, kind: output, shape index: {}]
  %s8 = sld [smem:[#allocation0]]
  $region66: #{tpu_custom_call.1} parent=0
    _
  %s10 = ssub.s32 1, %s8
  %s11 = scalar_select 0, %s10, %s8
  $region1: #{tpu_custom_call.1} parent=0
    #allocation2 [shape = 'u8[2048]{0}', space=vmem, size = 0x800, scoped, tag = 'input window, operand 0, single buffered']
    #allocation3 [shape = 's32[1]{0}', space=sflag, size = 0x4, scoped, tag = 'scoped memory for tpu_custom_call.1']
    #allocation4 [shape = 's32[1]{0}', space=sflag, size = 0x4, scoped, tag = 'scoped memory for tpu_custom_call.1']
    #allocation5 [shape = 'u8[2048]{0}', space=vmem, size = 0x800, scoped, tag = 'input window, operand 1, single buffered']
    #allocation6 [shape = 's32[1]{0}', space=sflag, size = 0x4, scoped, tag = 'scoped memory for tpu_custom_call.1']
    #allocation7 [shape = 'u8[512]{0}', space=vmem, size = 0x400, scoped, tag = 'input window, operand 2, single buffered']
    #allocation8 [shape = 'u8[32768]{0}', space=vmem, size = 0x8000, scoped, tag = 'input window, operand 3, single buffered']
    #allocation9 [shape = 's32[1]{0}', space=sflag, size = 0x4, scoped, tag = 'scoped memory for tpu_custom_call.1']
    #allocation10 [shape = 'u8[512]{0}', space=vmem, size = 0x400, scoped, tag = 'input window, operand 4, single buffered']
    #allocation11 [shape = 'u8[32768]{0}', space=vmem, size = 0x8000, scoped, tag = 'input window, operand 5, single buffered']
    #allocation12 [shape = 's32[1]{0}', space=sflag, size = 0x4, scoped, tag = 'scoped memory for tpu_custom_call.1']
    #allocation13 [shape = 'u8[512]{0}', space=vmem, size = 0x400, scoped, tag = 'input window, operand 6, single buffered']
    #allocation14 [shape = 'u8[4096]{0}', space=vmem, size = 0x1000, scoped, tag = 'output window, operand 0, single buffered']
    %12 = vsyncpa [#allocation3], 0
    %13 = vsyncpa [#allocation6], 0
    %14 = vsyncpa [#allocation9], 0
    %15 = vsyncpa [#allocation12], 0
    %16 = vsyncpa [#allocation4], 0
    // Predicated region
    $region2: #{tpu_custom_call.1} parent=1 // pred_check
      _
    $region3: #{tpu_custom_call.1} parent=1 // pred_check_branch
      %18 = sbr.rel (0) target = $region5
    $region4: #{tpu_custom_call.1} parent=1 // pred_region
      %s20 = ssub.s32 64, 64
      %21 = vsyncadd [#allocation3], %s20
      %s23 = sshll.u32 [#allocation2], 4
      %s24 = int_to_ptr.vmem [resolvable:$true] %s23
      %26 = dma.hbm_to_vmem [thread:$0]  %s0, 64, %s24, [#allocation3]
    $region5: #{tpu_custom_call.1} parent=1 // pred_fallthru
      _
    // Predicated region
    $region6: #{tpu_custom_call.1} parent=1 // pred_check
      _
    $region7: #{tpu_custom_call.1} parent=1 // pred_check_branch
      %28 = sbr.rel (0) target = $region9
    $region8: #{tpu_custom_call.1} parent=1 // pred_region
      %s30 = ssub.s32 64, 64
      %31 = vsyncadd [#allocation6], %s30
      %s33 = sshll.u32 [#allocation5], 4
      %s34 = int_to_ptr.vmem [resolvable:$true] %s33
      %36 = dma.hbm_to_vmem [thread:$0]  %s1, 64, %s34, [#allocation6]
    $region9: #{tpu_custom_call.1} parent=1 // pred_fallthru
      _
    // Predicated region
    $region10: #{tpu_custom_call.1} parent=1 // pred_check
      _
    $region11: #{tpu_custom_call.1} parent=1 // pred_check_branch
      %38 = sbr.rel (0) target = $region13
    $region12: #{tpu_custom_call.1} parent=1 // pred_region
      %s40 = ssub.s32 16, 16
      %41 = vsyncadd [#allocation6], %s40
      %s43 = sshll.u32 [#allocation7], 4
      %s44 = int_to_ptr.vmem [resolvable:$true] %s43
      %46 = dma.hbm_to_vmem [thread:$0]  %s2, 16, %s44, [#allocation6]
    $region13: #{tpu_custom_call.1} parent=1 // pred_fallthru
      _
    // Predicated region
    $region14: #{tpu_custom_call.1} parent=1 // pred_check
      _
    $region15: #{tpu_custom_call.1} parent=1 // pred_check_branch
      %48 = sbr.rel (0) target = $region17
    $region16: #{tpu_custom_call.1} parent=1 // pred_region
      %s50 = ssub.s32 1024, 1024
      %51 = vsyncadd [#allocation9], %s50
      %s52 = sshll.u32 [#allocation8], 4
      %s53 = int_to_ptr.vmem [resolvable:$true] %s52
      %58 = dma.hbm_to_vmem [thread:$0]  %s3, 1024, %s53, [#allocation9], 64, 64, 4
    $region17: #{tpu_custom_call.1} parent=1 // pred_fallthru
      _
    // Predicated region
    $region18: #{tpu_custom_call.1} parent=1 // pred_check
      _
    $region19: #{tpu_custom_call.1} parent=1 // pred_check_branch
      %60 = sbr.rel (0) target = $region21
    $region20: #{tpu_custom_call.1} parent=1 // pred_region
      %s62 = ssub.s32 16, 16
      %63 = vsyncadd [#allocation9], %s62
      %s65 = sshll.u32 [#allocation10], 4
      %s66 = int_to_ptr.vmem [resolvable:$true] %s65
      %68 = dma.hbm_to_vmem [thread:$0]  %s4, 16, %s66, [#allocation9]
    $region21: #{tpu_custom_call.1} parent=1 // pred_fallthru
      _
    // Predicated region
    $region22: #{tpu_custom_call.1} parent=1 // pred_check
      _
    $region23: #{tpu_custom_call.1} parent=1 // pred_check_branch
      %70 = sbr.rel (0) target = $region25
    $region24: #{tpu_custom_call.1} parent=1 // pred_region
      %s72 = ssub.s32 1024, 1024
      %73 = vsyncadd [#allocation12], %s72
      %s74 = sshll.u32 [#allocation11], 4
      %s75 = int_to_ptr.vmem [resolvable:$true] %s74
      %80 = dma.hbm_to_vmem [thread:$0]  %s5, 1024, %s75, [#allocation12], 64, 64, 4
    $region25: #{tpu_custom_call.1} parent=1 // pred_fallthru
      _
    // Predicated region
    $region26: #{tpu_custom_call.1} parent=1 // pred_check
      _
    $region27: #{tpu_custom_call.1} parent=1 // pred_check_branch
      %82 = sbr.rel (0) target = $region29
    $region28: #{tpu_custom_call.1} parent=1 // pred_region
      %s84 = ssub.s32 16, 16
      %85 = vsyncadd [#allocation12], %s84
      %s87 = sshll.u32 [#allocation13], 4
      %s88 = int_to_ptr.vmem [resolvable:$true] %s87
      %90 = dma.hbm_to_vmem [thread:$0]  %s6, 16, %s88, [#allocation12]
    $region29: #{tpu_custom_call.1} parent=1 // pred_fallthru
      _
    // Predicated region
    $region30: #{tpu_custom_call.1} parent=1 // pred_check
      _
    $region31: #{tpu_custom_call.1} parent=1 // pred_check_branch
      %92 = sbr.rel (0) target = $region33
    $region32: #{tpu_custom_call.1} parent=1 // pred_region
      %93 = dma.done [#allocation3], 64
    $region33: #{tpu_custom_call.1} parent=1 // pred_fallthru
      _
    // Predicated region
    $region34: #{tpu_custom_call.1} parent=1 // pred_check
      _
    $region35: #{tpu_custom_call.1} parent=1 // pred_check_branch
      %95 = sbr.rel (0) target = $region37
    $region36: #{tpu_custom_call.1} parent=1 // pred_region
      %96 = dma.done [#allocation6], 64
    $region37: #{tpu_custom_call.1} parent=1 // pred_fallthru
      _
    // Predicated region
    $region38: #{tpu_custom_call.1} parent=1 // pred_check
      _
    $region39: #{tpu_custom_call.1} parent=1 // pred_check_branch
      %98 = sbr.rel (0) target = $region41
    $region40: #{tpu_custom_call.1} parent=1 // pred_region
      %99 = dma.done [#allocation6], 16
    $region41: #{tpu_custom_call.1} parent=1 // pred_fallthru
      _
    // Predicated region
    $region42: #{tpu_custom_call.1} parent=1 // pred_check
      _
    $region43: #{tpu_custom_call.1} parent=1 // pred_check_branch
      %101 = sbr.rel (0) target = $region45
    $region44: #{tpu_custom_call.1} parent=1 // pred_region
      %102 = dma.done [#allocation9], 1024
    $region45: #{tpu_custom_call.1} parent=1 // pred_fallthru
      _
    // Predicated region
    $region46: #{tpu_custom_call.1} parent=1 // pred_check
      _
    $region47: #{tpu_custom_call.1} parent=1 // pred_check_branch
      %104 = sbr.rel (0) target = $region49
    $region48: #{tpu_custom_call.1} parent=1 // pred_region
      %105 = dma.done [#allocation9], 16
    $region49: #{tpu_custom_call.1} parent=1 // pred_fallthru
      _
    // Predicated region
    $region50: #{tpu_custom_call.1} parent=1 // pred_check
      _
    $region51: #{tpu_custom_call.1} parent=1 // pred_check_branch
      %107 = sbr.rel (0) target = $region53
    $region52: #{tpu_custom_call.1} parent=1 // pred_region
      %108 = dma.done [#allocation12], 1024
    $region53: #{tpu_custom_call.1} parent=1 // pred_fallthru
      _
    // Predicated region
    $region54: #{tpu_custom_call.1} parent=1 // pred_check
      _
    $region55: #{tpu_custom_call.1} parent=1 // pred_check_branch
      %110 = sbr.rel (0) target = $region57
    $region56: #{tpu_custom_call.1} parent=1 // pred_region
      %111 = dma.done [#allocation12], 16
    $region57: #{tpu_custom_call.1} parent=1 // pred_fallthru
      _
    %v113 = vld [vmem:[#allocation2] sm:$0xf]
    %v114 = vld [vmem:[#allocation5] sm:$0xf]
    %v115 = vld [vmem:[#allocation7] sm:$0x1]
    %v117 = vlaneseq
    %v118 = vshrl.u32 %v117, 7
    %v119 = vsub.s32 0, %v118
    %v120 = vrot.slane %v115, %v119
    %vm122 = vcmask 64512
    %v124 = vsel %vm122, %v113, 0
    %vm126 = vcmask 1043456
    %v128 = vsel %vm126, %v114, 0
    %130 = vmatprep.subr.bf16.mxu0 0
    %131 = vmatpush1.bf16.msra.mxu0 %v128
    %132 = vmatprep.subr.bf16.mxu0 0
    %133 = vmatpush1.bf16.msra.mxu0 0
    %134 = vmatprep.subr.bf16.mxu0 0
    %135 = vmatpush1.bf16.msra.mxu0 0
    %136 = vmatprep.subr.bf16.mxu0 0
    %137 = vmatpush1.bf16.msra.mxu0 0
    %138 = vmatprep.subr.bf16.mxu0 0
    %139 = vmatpush1.bf16.msra.mxu0 0
    %140 = vmatprep.subr.bf16.mxu0 0
    %141 = vmatpush1.bf16.msra.mxu0 0
    %142 = vmatprep.subr.bf16.mxu0 0
    %143 = vmatpush1.bf16.msra.mxu0 0
    %144 = vmatprep.subr.bf16.mxu0 0
    %145 = vmatpush1.bf16.msra.mxu0 0
    %146 = vmatprep.subr.bf16.mxu0 0
    %147 = vmatpush1.bf16.msra.mxu0 0
    %148 = vmatprep.subr.bf16.mxu0 0
    %149 = vmatpush1.bf16.msra.mxu0 0
    %150 = vmatprep.subr.bf16.mxu0 0
    %151 = vmatpush1.bf16.msra.mxu0 0
    %152 = vmatprep.subr.bf16.mxu0 0
    %153 = vmatpush1.bf16.msra.mxu0 0
    %154 = vmatprep.subr.bf16.mxu0 0
    %155 = vmatpush1.bf16.msra.mxu0 0
    %156 = vmatprep.subr.bf16.mxu0 0
    %157 = vmatpush1.bf16.msra.mxu0 0
    %158 = vmatprep.subr.bf16.mxu0 0
    %159 = vmatpush1.bf16.msra.mxu0 0
    %160 = vmatprep.subr.bf16.mxu0 0
    %161 = vmatpush1.bf16.msra.mxu0 0
    %162 = vmatprep.mubr.bf16.mxu0 0
    %163 = vmatmul.mubr.bf16.gmra.mrb[0].mxu0 %v124
    %v164 = vpop.f32.mrb[0].mxu0
    %v165 = vadd.f32 %v120, %v164
    %v166 = vpop.f32.mrb[0].mxu0
    %v167 = vpop.f32.mrb[0].mxu0
    %v168 = vpop.f32.mrb[0].mxu0
    %169 = vdwg.mxu0
    %v170 = vtanh.pop %v165
    %v171 = vpack.c.bf16 %v170, %v170
    %v172 = vld [vmem:[#allocation8] sm:$0xf]
    %v173 = vld [vmem:[#allocation8 + $0x4] sm:$0xf]
    %v174 = vld [vmem:[#allocation8 + $0x8] sm:$0xf]
    %v175 = vld [vmem:[#allocation8 + $0xc] sm:$0xf]
    %v176 = vld [vmem:[#allocation8 + $0x10] sm:$0xf]
    %v177 = vld [vmem:[#allocation8 + $0x14] sm:$0xf]
    %v178 = vld [vmem:[#allocation8 + $0x18] sm:$0xf]
    %v179 = vld [vmem:[#allocation8 + $0x1c] sm:$0xf]
    %v180 = vld [vmem:[#allocation8 + $0x20] sm:$0xf]
    %v181 = vld [vmem:[#allocation8 + $0x24] sm:$0xf]
    %v182 = vld [vmem:[#allocation8 + $0x28] sm:$0xf]
    %v183 = vld [vmem:[#allocation8 + $0x2c] sm:$0xf]
    %v184 = vld [vmem:[#allocation8 + $0x30] sm:$0xf]
    %v185 = vld [vmem:[#allocation8 + $0x34] sm:$0xf]
    %v186 = vld [vmem:[#allocation8 + $0x38] sm:$0xf]
    %v187 = vld [vmem:[#allocation8 + $0x3c] sm:$0xf]
    %v188 = vld [vmem:[#allocation10] sm:$0x1]
    %v190 = vlaneseq
    %v191 = vshrl.u32 %v190, 7
    %v192 = vsub.s32 0, %v191
    %v193 = vrot.slane %v188, %v192
    %v211 = vunpack.c.l.b16 %v172
    %v212 = vunpack.c.l.b16 %v173
    %v213 = vunpack.c.l.b16 %v174
    %v214 = vunpack.c.l.b16 %v175
    %v215 = vunpack.c.l.b16 %v176
    %v216 = vunpack.c.l.b16 %v177
    %v217 = vunpack.c.l.b16 %v178
    %v218 = vunpack.c.l.b16 %v179
    %v219 = vunpack.c.l.b16 %v180
    %v220 = vunpack.c.l.b16 %v181
    %v221 = vunpack.c.l.b16 %v182
    %v222 = vunpack.c.l.b16 %v183
    %v223 = vunpack.c.l.b16 %v184
    %v224 = vunpack.c.l.b16 %v185
    %v225 = vunpack.c.l.b16 %v186
    %v226 = vunpack.c.l.b16 %v187
    %v227 = vpack.c.b16 %v212, %v211
    %v228 = vpack.c.b16 %v214, %v213
    %v229 = vpack.c.b16 %v216, %v215
    %v230 = vpack.c.b16 %v218, %v217
    %v231 = vpack.c.b16 %v220, %v219
    %v232 = vpack.c.b16 %v222, %v221
    %v233 = vpack.c.b16 %v224, %v223
    %v234 = vpack.c.b16 %v226, %v225
    %243 = vmatprep.subr.bf16.mxu0 0
    %244 = vmatpush1.bf16.msra.mxu0 %v227
    %245 = vmatprep.subr.bf16.mxu0 0
    %246 = vmatpush1.bf16.msra.mxu0 %v228
    %247 = vmatprep.subr.bf16.mxu0 0
    %248 = vmatpush1.bf16.msra.mxu0 %v229
    %249 = vmatprep.subr.bf16.mxu0 0
    %250 = vmatpush1.bf16.msra.mxu0 %v230
    %251 = vmatprep.subr.bf16.mxu0 0
    %252 = vmatpush1.bf16.msra.mxu0 %v231
    %253 = vmatprep.subr.bf16.mxu0 0
    %254 = vmatpush1.bf16.msra.mxu0 %v232
    %255 = vmatprep.subr.bf16.mxu0 0
    %256 = vmatpush1.bf16.msra.mxu0 %v233
    %257 = vmatprep.subr.bf16.mxu0 0
    %258 = vmatpush1.bf16.msra.mxu0 %v234
    %259 = vmatprep.subr.bf16.mxu0 0
    %260 = vmatpush1.bf16.msra.mxu0 0
    %261 = vmatprep.subr.bf16.mxu0 0
    %262 = vmatpush1.bf16.msra.mxu0 0
    %263 = vmatprep.subr.bf16.mxu0 0
    %264 = vmatpush1.bf16.msra.mxu0 0
    %265 = vmatprep.subr.bf16.mxu0 0
    %266 = vmatpush1.bf16.msra.mxu0 0
    %267 = vmatprep.subr.bf16.mxu0 0
    %268 = vmatpush1.bf16.msra.mxu0 0
    %269 = vmatprep.subr.bf16.mxu0 0
    %270 = vmatpush1.bf16.msra.mxu0 0
    %271 = vmatprep.subr.bf16.mxu0 0
    %272 = vmatpush1.bf16.msra.mxu0 0
    %273 = vmatprep.subr.bf16.mxu0 0
    %274 = vmatpush1.bf16.msra.mxu0 0
    %275 = vmatprep.mubr.bf16.mxu0 0
    %276 = vmatmul.mubr.bf16.gmra.mrb[0].mxu0 %v171
    %v277 = vpop.f32.mrb[0].mxu0
    %v278 = vadd.f32 %v193, %v277
    %v279 = vpop.f32.mrb[0].mxu0
    %v280 = vpop.f32.mrb[0].mxu0
    %v281 = vpop.f32.mrb[0].mxu0
    %282 = vdwg.mxu0
    %v283 = vtanh.pop %v278
    %v284 = vpack.c.bf16 %v283, %v283
    %v285 = vld [vmem:[#allocation11] sm:$0xf]
    %v286 = vld [vmem:[#allocation11 + $0x4] sm:$0xf]
    %v287 = vld [vmem:[#allocation11 + $0x8] sm:$0xf]
    %v288 = vld [vmem:[#allocation11 + $0xc] sm:$0xf]
    %v289 = vld [vmem:[#allocation11 + $0x10] sm:$0xf]
    %v290 = vld [vmem:[#allocation11 + $0x14] sm:$0xf]
    %v291 = vld [vmem:[#allocation11 + $0x18] sm:$0xf]
    %v292 = vld [vmem:[#allocation11 + $0x1c] sm:$0xf]
    %v293 = vld [vmem:[#allocation11 + $0x20] sm:$0xf]
    %v294 = vld [vmem:[#allocation11 + $0x24] sm:$0xf]
    %v295 = vld [vmem:[#allocation11 + $0x28] sm:$0xf]
    %v296 = vld [vmem:[#allocation11 + $0x2c] sm:$0xf]
    %v297 = vld [vmem:[#allocation11 + $0x30] sm:$0xf]
    %v298 = vld [vmem:[#allocation11 + $0x34] sm:$0xf]
    %v299 = vld [vmem:[#allocation11 + $0x38] sm:$0xf]
    %v300 = vld [vmem:[#allocation11 + $0x3c] sm:$0xf]
    %v301 = vld [vmem:[#allocation13] sm:$0x1]
    %v303 = vlaneseq
    %v304 = vshrl.u32 %v303, 7
    %v305 = vsub.s32 0, %v304
    %v306 = vrot.slane %v301, %v305
    %v324 = vunpack.c.l.b16 %v285
    %v325 = vunpack.c.l.b16 %v286
    %v326 = vunpack.c.l.b16 %v287
    %v327 = vunpack.c.l.b16 %v288
    %v328 = vunpack.c.l.b16 %v289
    %v329 = vunpack.c.l.b16 %v290
    %v330 = vunpack.c.l.b16 %v291
    %v331 = vunpack.c.l.b16 %v292
    %v332 = vunpack.c.l.b16 %v293
    %v333 = vunpack.c.l.b16 %v294
    %v334 = vunpack.c.l.b16 %v295
    %v335 = vunpack.c.l.b16 %v296
    %v336 = vunpack.c.l.b16 %v297
    %v337 = vunpack.c.l.b16 %v298
    %v338 = vunpack.c.l.b16 %v299
    %v339 = vunpack.c.l.b16 %v300
    %v340 = vpack.c.b16 %v325, %v324
    %v341 = vpack.c.b16 %v327, %v326
    %v342 = vpack.c.b16 %v329, %v328
    %v343 = vpack.c.b16 %v331, %v330
    %v344 = vpack.c.b16 %v333, %v332
    %v345 = vpack.c.b16 %v335, %v334
    %v346 = vpack.c.b16 %v337, %v336
    %v347 = vpack.c.b16 %v339, %v338
    %356 = vmatprep.subr.bf16.mxu0 0
    %357 = vmatpush1.bf16.msra.mxu0 %v340
    %358 = vmatprep.subr.bf16.mxu0 0
    %359 = vmatpush1.bf16.msra.mxu0 %v341
    %360 = vmatprep.subr.bf16.mxu0 0
    %361 = vmatpush1.bf16.msra.mxu0 %v342
    %362 = vmatprep.subr.bf16.mxu0 0
    %363 = vmatpush1.bf16.msra.mxu0 %v343
    %364 = vmatprep.subr.bf16.mxu0 0
    %365 = vmatpush1.bf16.msra.mxu0 %v344
    %366 = vmatprep.subr.bf16.mxu0 0
    %367 = vmatpush1.bf16.msra.mxu0 %v345
    %368 = vmatprep.subr.bf16.mxu0 0
    %369 = vmatpush1.bf16.msra.mxu0 %v346
    %370 = vmatprep.subr.bf16.mxu0 0
    %371 = vmatpush1.bf16.msra.mxu0 %v347
    %372 = vmatprep.subr.bf16.mxu0 0
    %373 = vmatpush1.bf16.msra.mxu0 0
    %374 = vmatprep.subr.bf16.mxu0 0
    %375 = vmatpush1.bf16.msra.mxu0 0
    %376 = vmatprep.subr.bf16.mxu0 0
    %377 = vmatpush1.bf16.msra.mxu0 0
    %378 = vmatprep.subr.bf16.mxu0 0
    %379 = vmatpush1.bf16.msra.mxu0 0
    %380 = vmatprep.subr.bf16.mxu0 0
    %381 = vmatpush1.bf16.msra.mxu0 0
    %382 = vmatprep.subr.bf16.mxu0 0
    %383 = vmatpush1.bf16.msra.mxu0 0
    %384 = vmatprep.subr.bf16.mxu0 0
    %385 = vmatpush1.bf16.msra.mxu0 0
    %386 = vmatprep.subr.bf16.mxu0 0
    %387 = vmatpush1.bf16.msra.mxu0 0
    %388 = vmatprep.mubr.bf16.mxu0 0
    %389 = vmatmul.mubr.bf16.gmra.mrb[0].mxu0 %v284
    %v390 = vpop.f32.mrb[0].mxu0
    %v391 = vadd.f32 %v306, %v390
    %v392 = vpop.f32.mrb[0].mxu0
    %v393 = vpop.f32.mrb[0].mxu0
    %v394 = vpop.f32.mrb[0].mxu0
    %395 = vdwg.mxu0
    %396 = vst [vmem:[#allocation14] sm:$0xff] %v391
    // Predicated region
    $region58: #{tpu_custom_call.1} parent=1 // pred_check
      _
    $region59: #{tpu_custom_call.1} parent=1 // pred_check_branch
      %398 = sbr.rel (0) target = $region61
    $region60: #{tpu_custom_call.1} parent=1 // pred_region
      %s400 = ssub.s32 128, 128
      %401 = vsyncadd [#allocation4], %s400
      %s403 = sshll.u32 [#allocation14], 4
      %s404 = int_to_ptr.vmem [resolvable:$true] %s403
      %406 = dma.vmem_to_hbm [thread:$0]  %s404, 128, %s7, [#allocation4]
    $region61: #{tpu_custom_call.1} parent=1 // pred_fallthru
      _
    // Predicated region
    $region62: #{tpu_custom_call.1} parent=1 // pred_check
      _
    $region63: #{tpu_custom_call.1} parent=1 // pred_check_branch
      %408 = sbr.rel (0) target = $region65
    $region64: #{tpu_custom_call.1} parent=1 // pred_region
      %409 = dma.done [#allocation4], 128
    $region65: #{tpu_custom_call.1} parent=1 // pred_fallthru
      _
    %410 = vsyncpa [#allocation3], 1
    %411 = vsyncpa [#allocation6], 1
    %412 = vsyncpa [#allocation9], 1
    %413 = vsyncpa [#allocation12], 1
    %414 = vsyncpa [#allocation4], 1

</llo_original>
